<compile_context>
chip_gen: v7x
topology: tpu7x:2x2x1
jax: 0.10.0
libtpu: 0.0.40
codegen_flags: <defaults>
</compile_context>

<pallas_src>
import jax
import jax.numpy as jnp
from jax.experimental import pallas as pl
from jax.experimental.pallas import tpu as pltpu


def _complex_lin_kernel(x_ref, w_ref, b_ref, o_ref):
    # x_ref: (T, C_in, S_T)    w_ref: (C_in, C_out, 1)
    # b_ref: (1, C_out, 1)     o_ref: (T, C_out, S_T)
    c_in = x_ref.shape[1]

    # Tiny weight tile: load once, widen to f32 once (bf16-safe: operands are
    # widened before the multiply, accumulation stays f32).
    w = w_ref[...].astype(jnp.float32)                       # (C_in, C_out, 1)

    # Channel contraction on the VPU.  x_i is a (T, 1, S_T) sublane slice; the
    # multiply against (1, C_out, 1) keeps x_i in a sublane-replicated layout,
    # so the 1 -> C_out replication costs no extra XLU/VALU shuffles.  (A
    # stride-0 replicated load, x_ref[:, pl.ds(i, C_out, stride=0), :], is the
    # explicit-load form of the same broadcast.)
    acc = x_ref[:, pl.ds(0, 1), :].astype(jnp.float32) * w[0:1]
    for i in range(1, c_in):
        acc = acc + x_ref[:, pl.ds(i, 1), :].astype(jnp.float32) * w[i:i + 1]

    # Bias folded in once at the end -- no tile-sized f32 broadcast initializer.
    acc = acc + b_ref[...].astype(jnp.float32)
    o_ref[...] = acc.astype(o_ref.dtype)


def _sublane_pad(c, itemsize):
    """VMEM sublane padding: 8 for 4-byte dtypes, 16 for 2-byte, 32 for 1-byte."""
    sub = max(8, 32 // max(1, itemsize))
    return ((c + sub - 1) // sub) * sub


def _vmem_limit_bytes():
    """Generation-aware VMEM budget: 3/4 of physical, capped at 96 MiB.

    v5e/v6e (128 MiB physical) -> 96 MiB; v7x (64 MiB) -> 48 MiB;
    unknown / query unavailable -> assume the smallest (v7x) -> 48 MiB.
    """
    cap = 64 * 1024 * 1024
    try:
        cap = int(pltpu.get_tpu_info().vmem_capacity_bytes)
    except Exception:
        pass
    return max(16 * 1024 * 1024, min(cap * 3 // 4, 96 * 1024 * 1024))


def complex_lin(x, weight, bias, *, block_bytes=8 << 20):
    """ComplexLin forward.

    x:      (B, P, C_in, S)
    weight: (C_out, C_in)   (nn.Linear weight)
    bias:   (C_out,)
    returns (B, P, C_out, S)
    """
    B, P, c_in, S = x.shape
    c_out = weight.shape[0]
    BP = B * P
    isz = jnp.dtype(x.dtype).itemsize

    # Free reshapes only (merge/split leading axes) -- S stays on the lane axis.
    x3 = x.reshape(BP, c_in, S)
    w3 = weight.T.reshape(c_in, c_out, 1)
    b3 = bias.reshape(1, c_out, 1)

    pad_in = _sublane_pad(c_in, isz)
    pad_out = _sublane_pad(c_out, isz)
    vmem_limit = _vmem_limit_bytes()

    # --- S tiling: prefer full-S rows (grid_s == 1) so each row's DMA is one
    # contiguous segment.  Only split S when a single padded row would blow the
    # per-step byte budget; then use a lane-multiple tile.
    row_lane_bytes = (pad_in + pad_out) * isz        # padded I/O bytes per lane
    s_tile = S
    if S * row_lane_bytes > block_bytes and S > 512:
        s_tile = min(S, max(512, (block_bytes // row_lane_bytes) // 128 * 128))
    grid_s = pl.cdiv(S, s_tile)

    # --- BP tiling with *padded* VMEM accounting:
    #     2x double-buffered (input + output) blocks + f32 accumulator temp.
    io_row_bytes = s_tile * row_lane_bytes
    tot_row_bytes = 2 * io_row_bytes + s_tile * pad_out * 4
    bp_tile = max(1, min(BP,
                         block_bytes // max(1, io_row_bytes),
                         int(vmem_limit * 0.8) // max(1, tot_row_bytes)))
    grid_bp = pl.cdiv(BP, bp_tile)

    # --- Megacore friendliness (v7x has 2 TCs sharding "parallel" axes):
    # guarantee >= 2 grid steps and keep them evenly sized / even-count.
    if grid_bp * grid_s < 2 and BP >= 2:
        grid_bp = 2
    if grid_s == 1 and grid_bp > 1 and grid_bp % 2 == 1 and grid_bp < BP:
        grid_bp += 1
    bp_tile = pl.cdiv(BP, grid_bp)        # re-balance block sizes
    grid_bp = pl.cdiv(BP, bp_tile)

    y3 = pl.pallas_call(
        _complex_lin_kernel,
        out_shape=jax.ShapeDtypeStruct((BP, c_out, S), x.dtype),
        grid_spec=pltpu.PrefetchScalarGridSpec(
            num_scalar_prefetch=0,
            grid=(grid_bp, grid_s),
            in_specs=[
                pl.BlockSpec((bp_tile, c_in, s_tile), lambda n, s: (n, 0, s)),
                pl.BlockSpec((c_in, c_out, 1), lambda n, s: (0, 0, 0)),
                pl.BlockSpec((1, c_out, 1), lambda n, s: (0, 0, 0)),
            ],
            out_specs=pl.BlockSpec((bp_tile, c_out, s_tile),
                                   lambda n, s: (n, 0, s)),
        ),
        compiler_params=pltpu.CompilerParams(
            dimension_semantics=("parallel", "parallel"),
            vmem_limit_bytes=int(vmem_limit),
        ),
    )(x3, w3, b3)

    # Free reshape (splits the leading axis back).
    return y3.reshape(B, P, c_out, S)


if __name__ == "__main__":
    B, P, c_in, S = 2, 2, 4, 16
    c_out = 8

    key = jax.random.PRNGKey(0)
    kx, kw, kb = jax.random.split(key, 3)

    x = jax.random.normal(kx, (B, P, c_in, S), dtype=jnp.float32)
    # nn.Linear default init: U(-1/sqrt(in), 1/sqrt(in))
    bound = 1.0 / (c_in ** 0.5)
    weight = jax.random.uniform(kw, (c_out, c_in), jnp.float32, -bound, bound)
    bias = jax.random.uniform(kb, (c_out,), jnp.float32, -bound, bound)

    y = complex_lin(x, weight, bias)
    jax.block_until_ready(y)

    # Reference (pure JAX) check of the PyTorch forward semantics.
    ref = jnp.einsum("bpis,oi->bpos", x, weight) + bias[None, None, :, None]
    assert y.shape == (B, P, c_out, S)
    assert jnp.allclose(y, ref, atol=1e-5, rtol=1e-5)

    print("KERNEL_OK")
</pallas_src>

<mosaic_0001>
module attributes {stable_mosaic.version = 11 : i64} {
  func.func @_complex_lin_kernel(%arg0: i32, %arg1: i32, %arg2: memref<2x4x16xf32, #tpu.memory_space<vmem>>, %arg3: memref<4x8x1xf32, #tpu.memory_space<vmem>>, %arg4: memref<1x8x1xf32, #tpu.memory_space<vmem>>, %arg5: memref<2x8x16xf32, #tpu.memory_space<vmem>>) attributes {dimension_semantics = [#tpu.dimension_semantics<parallel>, #tpu.dimension_semantics<parallel>], iteration_bounds = array<i64: 2, 1>, scalar_prefetch = 0 : i64, scratch_operands = 0 : i64, tpu.core_type = #tpu.core_type<tc>, window_params = [{transform_indices = @transform_0, window_bounds = array<i64: 2, 4, 16>}, {pipeline_mode = #tpu.pipeline_mode<synchronous>, transform_indices = @transform_1, window_bounds = array<i64: 4, 8, 1>}, {pipeline_mode = #tpu.pipeline_mode<synchronous>, transform_indices = @transform_2, window_bounds = array<i64: 1, 8, 1>}, {transform_indices = @transform_3, window_bounds = array<i64: 2, 8, 16>}]} {
    %c0 = arith.constant 0 : index
    %c0_0 = arith.constant 0 : index
    %c0_1 = arith.constant 0 : index
    %0 = vector.load %arg3[%c0, %c0_0, %c0_1] : memref<4x8x1xf32, #tpu.memory_space<vmem>>, vector<4x8x1xf32>
    %c0_2 = arith.constant 0 : index
    %c0_3 = arith.constant 0 : index
    %c0_4 = arith.constant 0 : index
    %1 = vector.load %arg2[%c0_2, %c0_3, %c0_4] : memref<2x4x16xf32, #tpu.memory_space<vmem>>, vector<2x1x16xf32>
    %2 = vector.extract_strided_slice %0 {offsets = [0, 0, 0], sizes = [1, 8, 1], strides = [1, 1, 1]} : vector<4x8x1xf32> to vector<1x8x1xf32>
    %3 = vector.broadcast %1 : vector<2x1x16xf32> to vector<2x8x16xf32>
    %4 = vector.broadcast %2 : vector<1x8x1xf32> to vector<2x8x16xf32>
    %5 = arith.mulf %3, %4 : vector<2x8x16xf32>
    %c0_5 = arith.constant 0 : index
    %c1 = arith.constant 1 : index
    %c0_6 = arith.constant 0 : index
    %6 = vector.load %arg2[%c0_5, %c1, %c0_6] : memref<2x4x16xf32, #tpu.memory_space<vmem>>, vector<2x1x16xf32>
    %7 = vector.extract_strided_slice %0 {offsets = [1, 0, 0], sizes = [1, 8, 1], strides = [1, 1, 1]} : vector<4x8x1xf32> to vector<1x8x1xf32>
    %8 = vector.broadcast %6 : vector<2x1x16xf32> to vector<2x8x16xf32>
    %9 = vector.broadcast %7 : vector<1x8x1xf32> to vector<2x8x16xf32>
    %10 = arith.mulf %8, %9 : vector<2x8x16xf32>
    %11 = arith.addf %5, %10 : vector<2x8x16xf32>
    %c0_7 = arith.constant 0 : index
    %c2 = arith.constant 2 : index
    %c0_8 = arith.constant 0 : index
    %12 = vector.load %arg2[%c0_7, %c2, %c0_8] : memref<2x4x16xf32, #tpu.memory_space<vmem>>, vector<2x1x16xf32>
    %13 = vector.extract_strided_slice %0 {offsets = [2, 0, 0], sizes = [1, 8, 1], strides = [1, 1, 1]} : vector<4x8x1xf32> to vector<1x8x1xf32>
    %14 = vector.broadcast %12 : vector<2x1x16xf32> to vector<2x8x16xf32>
    %15 = vector.broadcast %13 : vector<1x8x1xf32> to vector<2x8x16xf32>
    %16 = arith.mulf %14, %15 : vector<2x8x16xf32>
    %17 = arith.addf %11, %16 : vector<2x8x16xf32>
    %c0_9 = arith.constant 0 : index
    %c3 = arith.constant 3 : index
    %c0_10 = arith.constant 0 : index
    %18 = vector.load %arg2[%c0_9, %c3, %c0_10] : memref<2x4x16xf32, #tpu.memory_space<vmem>>, vector<2x1x16xf32>
    %19 = vector.extract_strided_slice %0 {offsets = [3, 0, 0], sizes = [1, 8, 1], strides = [1, 1, 1]} : vector<4x8x1xf32> to vector<1x8x1xf32>
    %20 = vector.broadcast %18 : vector<2x1x16xf32> to vector<2x8x16xf32>
    %21 = vector.broadcast %19 : vector<1x8x1xf32> to vector<2x8x16xf32>
    %22 = arith.mulf %20, %21 : vector<2x8x16xf32>
    %23 = arith.addf %17, %22 : vector<2x8x16xf32>
    %c0_11 = arith.constant 0 : index
    %c0_12 = arith.constant 0 : index
    %c0_13 = arith.constant 0 : index
    %24 = vector.load %arg4[%c0_11, %c0_12, %c0_13] : memref<1x8x1xf32, #tpu.memory_space<vmem>>, vector<1x8x1xf32>
    %25 = vector.broadcast %24 : vector<1x8x1xf32> to vector<2x8x16xf32>
    %26 = arith.addf %23, %25 : vector<2x8x16xf32>
    %c0_14 = arith.constant 0 : index
    %c0_15 = arith.constant 0 : index
    %c0_16 = arith.constant 0 : index
    %27 = vector.load %arg5[%c0_14, %c0_15, %c0_16] : memref<2x8x16xf32, #tpu.memory_space<vmem>>, vector<2x8x16xf32>
    tpu.vector_store %arg5[%c0_14, %c0_15, %c0_16], %26 {strides = array<i32>} : memref<2x8x16xf32, #tpu.memory_space<vmem>>, vector<2x8x16xf32>,
    return
  }
  func.func @transform_0(%arg0: i32, %arg1: i32) -> (i32, i32, i32) {
    %c0_i32 = arith.constant 0 : i32
    %c0_i32_0 = arith.constant 0 : i32
    return %arg0, %c0_i32, %arg1 : i32, i32, i32
  }
  func.func @transform_1(%arg0: i32, %arg1: i32) -> (i32, i32, i32) {
    %c0_i32 = arith.constant 0 : i32
    %c0_i32_0 = arith.constant 0 : i32
    %c0_i32_1 = arith.constant 0 : i32
    %c0_i32_2 = arith.constant 0 : i32
    return %c0_i32, %c0_i32_0, %c0_i32_1 : i32, i32, i32
  }
  func.func @transform_2(%arg0: i32, %arg1: i32) -> (i32, i32, i32) {
    %c0_i32 = arith.constant 0 : i32
    %c0_i32_0 = arith.constant 0 : i32
    %c0_i32_1 = arith.constant 0 : i32
    %c0_i32_2 = arith.constant 0 : i32
    return %c0_i32, %c0_i32_0, %c0_i32_1 : i32, i32, i32
  }
  func.func @transform_3(%arg0: i32, %arg1: i32) -> (i32, i32, i32) {
    %c0_i32 = arith.constant 0 : i32
    %c0_i32_0 = arith.constant 0 : i32
    return %arg0, %c0_i32, %arg1 : i32, i32, i32
  }
}

</mosaic_0001>

<llo_original>
// kernel: tpu_custom_call.1
$region0: #{tpu_custom_call.1}
  #allocation0 [shape = 'u32[]', space=smem, size = 0x4, offset = 0x4, fixed_abs, tag = 'smem constant byte address 0x4 - core index']
  #allocation1 [shape = 'u32[144,128]{1,0:T(1,128)}', space=vmem, size = 0x12000, scoped, tag = 'internal scratch']
  %s0 = inlined_call_operand.vmem [shape: f32[4,4,16], index: 0, kind: input, shape index: {}]
  %s1 = inlined_call_operand.vmem [shape: f32[4,8,1], index: 1, kind: input, shape index: {}]
  %s2 = inlined_call_operand.vmem [shape: f32[1,8,1], index: 2, kind: input, shape index: {}]
  %s3 = inlined_call_operand.hbm [shape: f32[4,8,16], index: 3, kind: output, shape index: {}]
  %s4 = sld [smem:[#allocation0]]
  $region45: #{tpu_custom_call.1} parent=0
    _
  %s6 = ssub.s32 1, %s4
  %s7 = scalar_select 0, %s6, %s4
  $region1: #{tpu_custom_call.1} parent=0
    #allocation2 [shape = 'u8[16384]{0}', space=vmem, size = 0x4000, scoped, tag = 'output window, operand 0']
    #allocation3 [shape = 's32[2]{0}', space=sflag, size = 0x8, scoped, tag = 'scoped memory for tpu_custom_call.1']
    %8 = vsyncpa [#allocation3], 0
    %s9 = scalar_lea.sflag [#allocation3], 1
    %10 = vsyncpa %s9, 0
    loop: start=0, step=1, limit=4
    $region2: #{tpu_custom_call.1} parent=1 // loop_pre_header
      _
    $region3: #{tpu_custom_call.1} parent=1 // loop_header
      %s12 = sphi 0, %s16
      %p13 = scmp.ge.s32.totalorder %s12, 4
      %s19 = sphi 0, %s31
      %s20 = sphi 0, %s27
      %s21 = sphi 0, %s19
      %s22 = sphi 0, %s20
      %s23 = sphi 0, %s21
      %s24 = sphi 0, %s22
      %s36 = sphi 0, %s38
      %s39 = sphi 0, %s36
      %s40 = sphi 0, %s39
      %s56 = sphi 0, %s40
      %s60 = sphi 0, %s60
      %s62 = sphi 0, %s60
      %s63 = sphi 0, %s62
      %s77 = sphi 0, %s63
      %s81 = sphi 0, %s81
      %s83 = sphi 0, %s81
      %s84 = sphi 0, %s83
      %s98 = sphi 0, %s84
      %s106 = sphi 0, %s108
      %s109 = sphi 0, %s106
      %s110 = sphi 0, %s109
      %s126 = sphi 0, %s110
    $region4: #{tpu_custom_call.1} parent=1 // loop_header_branch
      %15 = sbr.rel (%p13) target = $region8
    $region5: #{tpu_custom_call.1} parent=1 // loop_body
      %s17 = ssub.s32 %s12, 1
      %s18 = ssub.s32 %s12, 2
      %s25 = sadd.s32 1, %s20
      %p26 = scmp.ge.s32.totalorder %s25, 1
      %s27 = scalar_select %p26, 0, %s25
      %s28 = sadd.s32 1, %s19
      %s29 = scalar_select %p26, %s28, %s19
      %p30 = scmp.ge.s32.totalorder %s29, 2
      %s31 = scalar_select %p30, 0, %s29
      %s32 = ssub.s32 %s19, %s31
      %s33 = ssub.s32 %s20, %s27
      %s34 = sor.u32 %s32, %s33
      %p35 = scmp.eq.s32.totalorder %s34, 0
      %s37 = sadd.s32 %s36, 1
      %s38 = scalar_select %p35, %s36, %s37
      %p41 = pneg %p35
      %p42 = scmp.eq.s32.totalorder %s12, 1
      %p43 = por %p41, %p42
      %p44 = scmp.ne.s32.totalorder %s36, %s39
      %p45 = scmp.eq.s32.totalorder %s12, 0
      %p46 = por %p44, %p45
      %p47 = scmp.ne.s32.totalorder %s36, %s39
      %p48 = scmp.eq.s32.totalorder %s17, 1
      %p49 = por %p47, %p48
      %p50 = scmp.ne.s32.totalorder %s39, %s40
      %p51 = scmp.eq.s32.totalorder %s17, 0
      %p52 = por %p50, %p51
      %p53 = scmp.ne.s32.totalorder %s39, %s40
      %p54 = scmp.eq.s32.totalorder %s18, 1
      %p55 = por %p53, %p54
      %p57 = scmp.ne.s32.totalorder %s40, %s56
      %p58 = scmp.eq.s32.totalorder %s18, 0
      %p59 = por %p57, %p58
      %s61 = sadd.s32 %s60, 1
      %p64 = scmp.eq.s32.totalorder %s12, 1
      %p65 = scmp.ne.s32.totalorder %s60, %s62
      %p66 = scmp.eq.s32.totalorder %s12, 0
      %p67 = por %p65, %p66
      %p68 = scmp.ne.s32.totalorder %s60, %s62
      %p69 = scmp.eq.s32.totalorder %s17, 1
      %p70 = por %p68, %p69
      %p71 = scmp.ne.s32.totalorder %s62, %s63
      %p72 = scmp.eq.s32.totalorder %s17, 0
      %p73 = por %p71, %p72
      %p74 = scmp.ne.s32.totalorder %s62, %s63
      %p75 = scmp.eq.s32.totalorder %s18, 1
      %p76 = por %p74, %p75
      %p78 = scmp.ne.s32.totalorder %s63, %s77
      %p79 = scmp.eq.s32.totalorder %s18, 0
      %p80 = por %p78, %p79
      %s82 = sadd.s32 %s81, 1
      %p85 = scmp.eq.s32.totalorder %s12, 1
      %p86 = scmp.ne.s32.totalorder %s81, %s83
      %p87 = scmp.eq.s32.totalorder %s12, 0
      %p88 = por %p86, %p87
      %p89 = scmp.ne.s32.totalorder %s81, %s83
      %p90 = scmp.eq.s32.totalorder %s17, 1
      %p91 = por %p89, %p90
      %p92 = scmp.ne.s32.totalorder %s83, %s84
      %p93 = scmp.eq.s32.totalorder %s17, 0
      %p94 = por %p92, %p93
      %p95 = scmp.ne.s32.totalorder %s83, %s84
      %p96 = scmp.eq.s32.totalorder %s18, 1
      %p97 = por %p95, %p96
      %p99 = scmp.ne.s32.totalorder %s84, %s98
      %p100 = scmp.eq.s32.totalorder %s18, 0
      %p101 = por %p99, %p100
      %s102 = ssub.s32 %s19, %s31
      %s103 = ssub.s32 %s20, %s27
      %s104 = sor.u32 %s102, %s103
      %p105 = scmp.eq.s32.totalorder %s104, 0
      %s107 = sadd.s32 %s106, 1
      %s108 = scalar_select %p105, %s106, %s107
      %p111 = pneg %p105
      %p112 = scmp.eq.s32.totalorder %s12, 1
      %p113 = por %p111, %p112
      %p114 = scmp.ne.s32.totalorder %s106, %s109
      %p115 = scmp.eq.s32.totalorder %s12, 0
      %p116 = por %p114, %p115
      %p117 = scmp.ne.s32.totalorder %s106, %s109
      %p118 = scmp.eq.s32.totalorder %s17, 1
      %p119 = por %p117, %p118
      %p120 = scmp.ne.s32.totalorder %s109, %s110
      %p121 = scmp.eq.s32.totalorder %s17, 0
      %p122 = por %p120, %p121
      %p123 = scmp.ne.s32.totalorder %s109, %s110
      %p124 = scmp.eq.s32.totalorder %s18, 1
      %p125 = por %p123, %p124
      %p127 = scmp.ne.s32.totalorder %s110, %s126
      %p128 = scmp.eq.s32.totalorder %s18, 0
      %p129 = por %p127, %p128
      %p130 = scmp.le.s32.totalorder 1, %s12
      %p131 = scmp.lt.s32.totalorder %s12, 3
      %p132 = pnand %p130, %p131
      %p133 = pneg %p132
      // Predicated region
      $region9: #{tpu_custom_call.1} parent=5 // pred_check
        _
      $region10: #{tpu_custom_call.1} parent=5 // pred_check_branch
        %135 = sbr.rel (%p132) target = $region12
      $region11: #{tpu_custom_call.1} parent=5 // pred_region
        %s136 = ssub.s32 %s12, 1
        // Predicated region
        $region13: #{tpu_custom_call.1} parent=11 // pred_check
          %p137 = pneg %p73
        $region14: #{tpu_custom_call.1} parent=11 // pred_check_branch
          %139 = sbr.rel (%p137) target = $region16
        $region15: #{tpu_custom_call.1} parent=11 // pred_region
          _
        $region16: #{tpu_custom_call.1} parent=11 // pred_fallthru
          _
        // Predicated region
        $region17: #{tpu_custom_call.1} parent=11 // pred_check
          %p140 = pneg %p94
        $region18: #{tpu_custom_call.1} parent=11 // pred_check_branch
          %142 = sbr.rel (%p140) target = $region20
        $region19: #{tpu_custom_call.1} parent=11 // pred_region
          _
        $region20: #{tpu_custom_call.1} parent=11 // pred_fallthru
          _
      $region12: #{tpu_custom_call.1} parent=5 // pred_fallthru
        _
      %p143 = scmp.lt.s32.totalorder %s12, 2
      // Predicated region
      $region21: #{tpu_custom_call.1} parent=5 // pred_check
        %p144 = pneg %p143
      $region22: #{tpu_custom_call.1} parent=5 // pred_check_branch
        %146 = sbr.rel (%p144) target = $region24
      $region23: #{tpu_custom_call.1} parent=5 // pred_region
        // Predicated region
        $region25: #{tpu_custom_call.1} parent=23 // pred_check
          %p147 = pneg %p46
        $region26: #{tpu_custom_call.1} parent=23 // pred_check_branch
          %149 = sbr.rel (%p147) target = $region28
        $region27: #{tpu_custom_call.1} parent=23 // pred_region
          %s150 = smul.u32 2, %s19
          %p151 = scmp.lt.s32.totalorder %s150, 3
          %s152 = scalar_select %p151, %s150, 3
          %p153 = scmp.lt.s32.totalorder %s20, 0
          %s154 = scalar_select %p153, %s20, 0
          %s155 = sadd.s32 %s154, %s152
          %s156 = smul.addr %s155, 4
          %s157 = scalar_lea.vmem %s0, %s156
          %s158 = smul.u32 2, %s19
        $region28: #{tpu_custom_call.1} parent=23 // pred_fallthru
          _
      $region24: #{tpu_custom_call.1} parent=5 // pred_fallthru
        _
      %p159 = scmp.le.s32.totalorder 1, %s12
      %p160 = scmp.lt.s32.totalorder %s12, 3
      %p161 = pnand %p159, %p160
      %p162 = pneg %p161
      // Predicated region
      $region29: #{tpu_custom_call.1} parent=5 // pred_check
        _
      $region30: #{tpu_custom_call.1} parent=5 // pred_check_branch
        %164 = sbr.rel (%p161) target = $region32
      $region31: #{tpu_custom_call.1} parent=5 // pred_region
        %s165 = ssub.s32 %s12, 1
        %s166 = smul.u32 2, %s21
        %p167 = scmp.lt.s32.totalorder %s166, 3
        %s168 = scalar_select %p167, %s166, 3
        %p169 = scmp.lt.s32.totalorder %s22, 0
        %s170 = scalar_select %p169, %s22, 0
        %s171 = sadd.s32 %s170, %s168
        %s172 = smul.addr %s171, 4
        %s173 = scalar_lea.vmem %s0, %s172
        %p174 = pneg %p52
        %p175 = pneg %p49
        %p176 = pneg %p73
        %p177 = pneg %p70
        %p178 = pneg %p94
        %p179 = pneg %p91
        %p180 = pneg %p122
        %p181 = pneg %p119
        %s182 = sand.u32 %s109, 1
        %s183 = scalar_lea.sflag [#allocation3], %s182
        %s184 = sand.u32 %s109, 1
        %s185 = smul.addr %s184, 16
        %s186 = scalar_lea.vmem [#allocation2], %s185
        %s187 = smul.u32 2, %s21
        %p188 = scmp.lt.s32.totalorder %s187, 3
        %s189 = scalar_select %p188, %s187, 3
        %p190 = scmp.lt.s32.totalorder %s22, 0
        %s191 = scalar_select %p190, %s22, 0
        %s192 = sadd.s32 %s191, %s189
        %s193 = smul.addr %s192, 4
        %s194 = scalar_lea.vmem %s0, %s193
        %s195 = smul.u32 2, %s21
        %s196 = smul.u32 2, %s21
        %v197 = vld [vmem:[%s1] sm:$0xff]
        %v198 = vld [vmem:[%s1 + $0x8] sm:$0xff]
        %v199 = vld [vmem:[%s1 + $0x10] sm:$0xff]
        %v200 = vld [vmem:[%s1 + $0x18] sm:$0xff]
        %v201 = vld [vmem:[%s194] sm:$0x1]
        %v202 = vld [vmem:[%s194 + $0x4] sm:$0x1]
        %v203 = vlaneseq
        %v204 = vshrl.u32 %v203, 7
        %v205 = vsub.s32 0, %v204
        %v206 = vrot.slane %v201, %v205
        %v207 = vlaneseq
        %v208 = vshrl.u32 %v207, 7
        %v209 = vsub.s32 0, %v208
        %v210 = vrot.slane %v202, %v209
        %212 = vset.pattern.permute.xlu0 0
        %213 = vperm.xlu0 %212, %v197
        %v214 = vpop.permute.xlu0 %213
        %v216 = vmul.f32 %v206, %v214
        %v217 = vmul.f32 %v210, %v214
        %v218 = vld [vmem:[%s194 + $0x1] sm:$0x1]
        %v219 = vld [vmem:[%s194 + $0x5] sm:$0x1]
        %v220 = vlaneseq
        %v221 = vshrl.u32 %v220, 7
        %v222 = vsub.s32 0, %v221
        %v223 = vrot.slane %v218, %v222
        %v224 = vlaneseq
        %v225 = vshrl.u32 %v224, 7
        %v226 = vsub.s32 0, %v225
        %v227 = vrot.slane %v219, %v226
        %229 = vset.pattern.permute.xlu0 0
        %230 = vperm.xlu0 %229, %v198
        %v231 = vpop.permute.xlu0 %230
        %v233 = vmul.f32 %v223, %v231
        %v234 = vmul.f32 %v227, %v231
        %v235 = vadd.f32 %v216, %v233
        %v236 = vadd.f32 %v217, %v234
        %v237 = vld [vmem:[%s194 + $0x2] sm:$0x1]
        %v238 = vld [vmem:[%s194 + $0x6] sm:$0x1]
        %v239 = vlaneseq
        %v240 = vshrl.u32 %v239, 7
        %v241 = vsub.s32 0, %v240
        %v242 = vrot.slane %v237, %v241
        %v243 = vlaneseq
        %v244 = vshrl.u32 %v243, 7
        %v245 = vsub.s32 0, %v244
        %v246 = vrot.slane %v238, %v245
        %248 = vset.pattern.permute.xlu0 0
        %249 = vperm.xlu0 %248, %v199
        %v250 = vpop.permute.xlu0 %249
        %v252 = vmul.f32 %v242, %v250
        %v253 = vmul.f32 %v246, %v250
        %v254 = vadd.f32 %v235, %v252
        %v255 = vadd.f32 %v236, %v253
        %v256 = vld [vmem:[%s194 + $0x3] sm:$0x1]
        %v257 = vld [vmem:[%s194 + $0x7] sm:$0x1]
        %v258 = vlaneseq
        %v259 = vshrl.u32 %v258, 7
        %v260 = vsub.s32 0, %v259
        %v261 = vrot.slane %v256, %v260
        %v262 = vlaneseq
        %v263 = vshrl.u32 %v262, 7
        %v264 = vsub.s32 0, %v263
        %v265 = vrot.slane %v257, %v264
        %267 = vset.pattern.permute.xlu0 0
        %268 = vperm.xlu0 %267, %v200
        %v269 = vpop.permute.xlu0 %268
        %v271 = vmul.f32 %v261, %v269
        %v272 = vmul.f32 %v265, %v269
        %v273 = vadd.f32 %v254, %v271
        %v274 = vadd.f32 %v255, %v272
        %v275 = vld [vmem:[%s2] sm:$0xff]
        %277 = vset.pattern.permute.xlu0 0
        %278 = vperm.xlu0 %277, %v275
        %v279 = vpop.permute.xlu0 %278
        %v281 = vadd.f32 %v273, %v279
        %v282 = vadd.f32 %v274, %v279
        %vm283 = vcmask 130048
        %284 = vst.msk [vmem:[%s186] sm:$0xff] %vm283, %v281
        %285 = vst.msk [vmem:[%s186 + $0x8] sm:$0xff] %vm283, %v282
        %s286 = sand.u32 %s109, 1
        %s287 = scalar_lea.sflag [#allocation3], %s286
        %s288 = sand.u32 %s109, 1
        %s289 = smul.addr %s288, 16
        %s290 = scalar_lea.vmem [#allocation2], %s289
        // Predicated region
        $region33: #{tpu_custom_call.1} parent=31 // pred_check
          %p291 = pneg %p119
        $region34: #{tpu_custom_call.1} parent=31 // pred_check_branch
          %293 = sbr.rel (%p291) target = $region36
        $region35: #{tpu_custom_call.1} parent=31 // pred_region
          %s294 = smul.u32 2, %s21
          %s296 = ssub.s32 256, 256
          %297 = vsyncadd %s287, %s296
          %s298 = sadd.s32 %s22, %s294
          %s299 = smul.addr %s298, 128
          %s300 = scalar_lea.hbm %s3, %s299
          %s301 = sshll.u32 %s290, 4
          %s302 = int_to_ptr.vmem [resolvable:$true] %s301
          %307 = dma.vmem_to_hbm [thread:$0]  %s302, 256, %s300, %s287, 128, 128, 8
        $region36: #{tpu_custom_call.1} parent=31 // pred_fallthru
          _
      $region32: #{tpu_custom_call.1} parent=5 // pred_fallthru
        _
      %p308 = scmp.le.s32.totalorder 2, %s12
      // Predicated region
      $region37: #{tpu_custom_call.1} parent=5 // pred_check
        %p309 = pneg %p308
      $region38: #{tpu_custom_call.1} parent=5 // pred_check_branch
        %311 = sbr.rel (%p309) target = $region40
      $region39: #{tpu_custom_call.1} parent=5 // pred_region
        %s312 = ssub.s32 %s12, 2
        // Predicated region
        $region41: #{tpu_custom_call.1} parent=39 // pred_check
          %p313 = pneg %p125
        $region42: #{tpu_custom_call.1} parent=39 // pred_check_branch
          %315 = sbr.rel (%p313) target = $region44
        $region43: #{tpu_custom_call.1} parent=39 // pred_region
          %s316 = sand.u32 %s110, 1
          %s317 = scalar_lea.sflag [#allocation3], %s316
          %s318 = sand.u32 %s110, 1
          %s319 = smul.addr %s318, 16
          %s320 = scalar_lea.vmem [#allocation2], %s319
          %321 = dma.done %s317, 256
        $region44: #{tpu_custom_call.1} parent=39 // pred_fallthru
          _
      $region40: #{tpu_custom_call.1} parent=5 // pred_fallthru
        _
    $region6: #{tpu_custom_call.1} parent=1 // loop_footer
      %s16 = sadd.s32 1, %s12
    $region7: #{tpu_custom_call.1} parent=1 // loop_footer_branch
      %11 = sbr.rel target = $region3
    $region8: #{tpu_custom_call.1} parent=1 // loop_exit
      _
    %322 = vsyncpa [#allocation3], 1
    %s323 = scalar_lea.sflag [#allocation3], 1
    %324 = vsyncpa %s323, 1

</llo_original>
